<compile_context>
chip_gen: v5e
topology: v5e:2x2
jax: 0.10.0
libtpu: 0.0.40
codegen_flags: <defaults>
</compile_context>

<pallas_src>
import functools

import jax
import jax.numpy as jnp
import numpy as np
from jax.experimental import pallas as pl
from jax.experimental.pallas import tpu as pltpu

_LANES = 128


def _correlation_formula(a, b, c, d, L):
    """SC correlation formula (mirrors Correlation.forward()). All (1,1) f32."""
    ad_minus_bc = a * d - b * c
    a_plus_b = a + b
    a_plus_c = a + c
    a_minus_d = a - d
    ones = jnp.ones_like(a)
    zeros = jnp.zeros_like(a)
    denom_gt = jnp.maximum(
        jnp.minimum(a_plus_b, a_plus_c) * L - a_plus_b * a_plus_c, ones)
    denom_le = jnp.maximum(
        a_plus_b * a_plus_c - jnp.maximum(a_minus_d, zeros) * L, ones)
    # Select denominator first, divide once (both denominators are >= 1).
    denom = jnp.where(ad_minus_bc > 0.0, denom_gt, denom_le)
    return ad_minus_bc / denom


def _fused_correlation_kernel(x_ref, y_ref, out_ref, *, length, pad):
    """Fused Monitor() accumulation + forward() formula in one kernel."""
    x = x_ref[...]                      # (rows, 128) f32 bits, zero padded
    y = y_ref[...]

    x1 = (x != 0.0).astype(jnp.float32)  # in_1_is_1
    y1 = (y != 0.0).astype(jnp.float32)  # in_2_is_1
    x0 = 1.0 - x1                        # in_1_is_0
    y0 = 1.0 - y1                        # in_2_is_0

    def _rsum(v):  # lane reduce then sublane reduce -> (1, 1)
        return jnp.sum(jnp.sum(v, axis=1, keepdims=True), axis=0, keepdims=True)

    a = _rsum(x1 * y1)            # paired_11_a
    b = _rsum(x1 * y0)            # paired_10_b
    c = _rsum(x0 * y1)            # paired_01_c
    d = _rsum(x0 * y0) - pad      # paired_00_d (remove zero-padding (0,0) pairs)
    L = jnp.full_like(a, length)  # self.len (one Monitor call per time step)

    out_ref[...] = _correlation_formula(a, b, c, d, L)


def _packed_correlation_kernel(p_ref, out_ref):
    """Standalone forward(): counters packed as one (1, 8) operand
    [a, b, c, d, len, 0, 0, 0]."""
    p = p_ref[...]
    a = p[:, 0:1]
    b = p[:, 1:2]
    c = p[:, 2:3]
    d = p[:, 3:4]
    L = p[:, 4:5]
    out_ref[...] = _correlation_formula(a, b, c, d, L)


def correlation_fused(in_1, in_2):
    """One launch: streams in, correlation scalar out (Monitor + forward)."""
    in_1 = jnp.asarray(in_1, jnp.float32).reshape(-1)
    in_2 = jnp.asarray(in_2, jnp.float32).reshape(-1)
    n = in_1.shape[0]
    rows = max(1, (n + _LANES - 1) // _LANES)
    padded = rows * _LANES
    pad = padded - n
    x = jnp.pad(in_1, (0, pad)).reshape(rows, _LANES)
    y = jnp.pad(in_2, (0, pad)).reshape(rows, _LANES)

    kernel = functools.partial(
        _fused_correlation_kernel, length=float(n), pad=float(pad))
    out = pl.pallas_call(
        kernel,
        out_shape=jax.ShapeDtypeStruct((1, 1), jnp.float32),
        in_specs=[pl.BlockSpec(memory_space=pltpu.VMEM)] * 2,
        out_specs=pl.BlockSpec(memory_space=pltpu.VMEM),
    )(x, y)
    return out.reshape(1)


def correlation_forward(paired_11_a, paired_10_b, paired_01_c, paired_00_d, length):
    """Mirror of Correlation.forward() from stored counters (single packed DMA)."""
    vals = jnp.stack([
        jnp.asarray(paired_11_a, jnp.float32).reshape(()),
        jnp.asarray(paired_10_b, jnp.float32).reshape(()),
        jnp.asarray(paired_01_c, jnp.float32).reshape(()),
        jnp.asarray(paired_00_d, jnp.float32).reshape(()),
        jnp.asarray(length, jnp.float32).reshape(()),
    ]).reshape(1, 5)
    packed = jnp.zeros((1, 8), jnp.float32).at[:, :5].set(vals)

    out = pl.pallas_call(
        _packed_correlation_kernel,
        out_shape=jax.ShapeDtypeStruct((1, 1), jnp.float32),
        in_specs=[pl.BlockSpec(memory_space=pltpu.VMEM)],
        out_specs=pl.BlockSpec(memory_space=pltpu.VMEM),
    )(packed)
    return out.reshape(1)


def monitor_counts(in_1, in_2):
    """Plain-JAX replica of Monitor() accumulation (used for the packed path
    and for the reference check)."""
    in_1 = jnp.asarray(in_1, jnp.float32)
    in_2 = jnp.asarray(in_2, jnp.float32)
    in_1_is_0 = (in_1 == 0).astype(jnp.float32)
    in_1_is_1 = 1.0 - in_1_is_0
    in_2_is_0 = (in_2 == 0).astype(jnp.float32)
    in_2_is_1 = 1.0 - in_2_is_0
    d = jnp.sum(in_1_is_0 * in_2_is_0).reshape(1)   # paired_00_d
    c = jnp.sum(in_1_is_0 * in_2_is_1).reshape(1)   # paired_01_c
    b = jnp.sum(in_1_is_1 * in_2_is_0).reshape(1)   # paired_10_b
    a = jnp.sum(in_1_is_1 * in_2_is_1).reshape(1)   # paired_11_a
    length = jnp.array([in_1.shape[0]], jnp.float32)
    return a, b, c, d, length


def _reference(a, b, c, d, L):
    a, b, c, d, L = [np.asarray(x, np.float64) for x in (a, b, c, d, L)]
    ad_minus_bc = a * d - b * c
    ad_gt_bc = (ad_minus_bc > 0).astype(np.float64)
    ad_le_bc = 1.0 - ad_gt_bc
    a_plus_b = a + b
    a_plus_c = a + c
    a_minus_d = a - d
    denom_gt = np.maximum(np.minimum(a_plus_b, a_plus_c) * L - a_plus_b * a_plus_c, 1.0)
    denom_le = np.maximum(a_plus_b * a_plus_c - np.maximum(a_minus_d, 0.0) * L, 1.0)
    return ad_gt_bc * (ad_minus_bc / denom_gt) + ad_le_bc * (ad_minus_bc / denom_le)


if __name__ == "__main__":
    key = jax.random.PRNGKey(0)
    k1, k2 = jax.random.split(key)
    stream_len = 256  # number of Monitor() calls
    in_1 = jax.random.bernoulli(k1, p=0.6, shape=(stream_len,)).astype(jnp.float32)
    in_2 = jax.random.bernoulli(k2, p=0.4, shape=(stream_len,)).astype(jnp.float32)

    # Reference counters (also feed the packed standalone forward()).
    a, b, c, d, length = monitor_counts(in_1, in_2)
    ref = _reference(a, b, c, d, length)

    # 1) Fused single-launch path: streams -> correlation.
    out_fused = jax.block_until_ready(correlation_fused(in_1, in_2))
    np.testing.assert_allclose(np.asarray(out_fused), ref, rtol=1e-5, atol=1e-6)

    # 2) Standalone forward() from stored counters (single packed operand).
    out_fwd = jax.block_until_ready(correlation_forward(a, b, c, d, length))
    np.testing.assert_allclose(np.asarray(out_fwd), ref, rtol=1e-5, atol=1e-6)

    print("KERNEL_OK")
</pallas_src>

<mosaic_0001>
module attributes {stable_mosaic.version = 11 : i64} {
  func.func @_fused_correlation_kernel(%arg0: memref<2x128xf32, #tpu.memory_space<vmem>>, %arg1: memref<2x128xf32, #tpu.memory_space<vmem>>, %arg2: memref<1x1xf32, #tpu.memory_space<vmem>>) attributes {dimension_semantics = [], scalar_prefetch = 0 : i64, scratch_operands = 0 : i64, tpu.core_type = #tpu.core_type<tc>} {
    %c0 = arith.constant 0 : index
    %c0_0 = arith.constant 0 : index
    %0 = vector.load %arg0[%c0, %c0_0] : memref<2x128xf32, #tpu.memory_space<vmem>>, vector<2x128xf32>
    %c0_1 = arith.constant 0 : index
    %c0_2 = arith.constant 0 : index
    %1 = vector.load %arg1[%c0_1, %c0_2] : memref<2x128xf32, #tpu.memory_space<vmem>>, vector<2x128xf32>
    %cst = arith.constant 0.000000e+00 : f32
    %2 = vector.broadcast %cst : f32 to vector<2x128xf32>
    %3 = arith.cmpf one, %0, %2 : vector<2x128xf32>
    %4 = arith.extui %3 : vector<2x128xi1> to vector<2x128xi32>
    %5 = arith.sitofp %4 : vector<2x128xi32> to vector<2x128xf32>
    %cst_3 = arith.constant 0.000000e+00 : f32
    %6 = vector.broadcast %cst_3 : f32 to vector<2x128xf32>
    %7 = arith.cmpf one, %1, %6 : vector<2x128xf32>
    %8 = arith.extui %7 : vector<2x128xi1> to vector<2x128xi32>
    %9 = arith.sitofp %8 : vector<2x128xi32> to vector<2x128xf32>
    %cst_4 = arith.constant 1.000000e+00 : f32
    %10 = vector.broadcast %cst_4 : f32 to vector<2x128xf32>
    %11 = arith.subf %10, %5 : vector<2x128xf32>
    %cst_5 = arith.constant 1.000000e+00 : f32
    %12 = vector.broadcast %cst_5 : f32 to vector<2x128xf32>
    %13 = arith.subf %12, %9 : vector<2x128xf32>
    %14 = arith.mulf %5, %9 : vector<2x128xf32>
    %cst_6 = arith.constant dense<0.000000e+00> : vector<2xf32>
    %15 = vector.multi_reduction <add>, %14, %cst_6 [1] : vector<2x128xf32> to vector<2xf32>
    %16 = vector.shape_cast %15 : vector<2xf32> to vector<2x1xf32>
    %cst_7 = arith.constant dense<0.000000e+00> : vector<1xf32>
    %17 = vector.multi_reduction <add>, %16, %cst_7 [0] : vector<2x1xf32> to vector<1xf32>
    %18 = vector.shape_cast %17 : vector<1xf32> to vector<1x1xf32>
    %19 = arith.mulf %5, %13 : vector<2x128xf32>
    %cst_8 = arith.constant dense<0.000000e+00> : vector<2xf32>
    %20 = vector.multi_reduction <add>, %19, %cst_8 [1] : vector<2x128xf32> to vector<2xf32>
    %21 = vector.shape_cast %20 : vector<2xf32> to vector<2x1xf32>
    %cst_9 = arith.constant dense<0.000000e+00> : vector<1xf32>
    %22 = vector.multi_reduction <add>, %21, %cst_9 [0] : vector<2x1xf32> to vector<1xf32>
    %23 = vector.shape_cast %22 : vector<1xf32> to vector<1x1xf32>
    %24 = arith.mulf %11, %9 : vector<2x128xf32>
    %cst_10 = arith.constant dense<0.000000e+00> : vector<2xf32>
    %25 = vector.multi_reduction <add>, %24, %cst_10 [1] : vector<2x128xf32> to vector<2xf32>
    %26 = vector.shape_cast %25 : vector<2xf32> to vector<2x1xf32>
    %cst_11 = arith.constant dense<0.000000e+00> : vector<1xf32>
    %27 = vector.multi_reduction <add>, %26, %cst_11 [0] : vector<2x1xf32> to vector<1xf32>
    %28 = vector.shape_cast %27 : vector<1xf32> to vector<1x1xf32>
    %29 = arith.mulf %11, %13 : vector<2x128xf32>
    %cst_12 = arith.constant dense<0.000000e+00> : vector<2xf32>
    %30 = vector.multi_reduction <add>, %29, %cst_12 [1] : vector<2x128xf32> to vector<2xf32>
    %31 = vector.shape_cast %30 : vector<2xf32> to vector<2x1xf32>
    %cst_13 = arith.constant dense<0.000000e+00> : vector<1xf32>
    %32 = vector.multi_reduction <add>, %31, %cst_13 [0] : vector<2x1xf32> to vector<1xf32>
    %33 = vector.shape_cast %32 : vector<1xf32> to vector<1x1xf32>
    %cst_14 = arith.constant 0.000000e+00 : f32
    %34 = vector.broadcast %cst_14 : f32 to vector<1x1xf32>
    %35 = arith.subf %33, %34 : vector<1x1xf32>
    %cst_15 = arith.constant 2.560000e+02 : f32
    %36 = vector.broadcast %cst_15 : f32 to vector<1x1xf32>
    %37 = arith.mulf %18, %35 : vector<1x1xf32>
    %38 = arith.mulf %23, %28 : vector<1x1xf32>
    %39 = arith.subf %37, %38 : vector<1x1xf32>
    %40 = arith.addf %18, %23 : vector<1x1xf32>
    %41 = arith.addf %18, %28 : vector<1x1xf32>
    %42 = arith.subf %18, %35 : vector<1x1xf32>
    %cst_16 = arith.constant 1.000000e+00 : f32
    %43 = vector.broadcast %cst_16 : f32 to vector<1x1xf32>
    %cst_17 = arith.constant 0.000000e+00 : f32
    %44 = vector.broadcast %cst_17 : f32 to vector<1x1xf32>
    %45 = arith.minimumf %40, %41 : vector<1x1xf32>
    %46 = arith.mulf %45, %36 : vector<1x1xf32>
    %47 = arith.mulf %40, %41 : vector<1x1xf32>
    %48 = arith.subf %46, %47 : vector<1x1xf32>
    %49 = arith.maximumf %48, %43 : vector<1x1xf32>
    %50 = arith.mulf %40, %41 : vector<1x1xf32>
    %51 = arith.maximumf %42, %44 : vector<1x1xf32>
    %52 = arith.mulf %51, %36 : vector<1x1xf32>
    %53 = arith.subf %50, %52 : vector<1x1xf32>
    %54 = arith.maximumf %53, %43 : vector<1x1xf32>
    %cst_18 = arith.constant 0.000000e+00 : f32
    %55 = vector.broadcast %cst_18 : f32 to vector<1x1xf32>
    %56 = arith.cmpf ogt, %39, %55 : vector<1x1xf32>
    %57 = arith.select %56, %49, %54 : vector<1x1xi1>, vector<1x1xf32>
    %58 = arith.divf %39, %57 : vector<1x1xf32>
    %c0_19 = arith.constant 0 : index
    %c0_20 = arith.constant 0 : index
    %59 = vector.load %arg2[%c0_19, %c0_20] : memref<1x1xf32, #tpu.memory_space<vmem>>, vector<1x1xf32>
    tpu.vector_store %arg2[%c0_19, %c0_20], %58 {strides = array<i32>} : memref<1x1xf32, #tpu.memory_space<vmem>>, vector<1x1xf32>,
    return
  }
}

</mosaic_0001>

<llo_original>
// kernel: tpu_custom_call.1
$region0: #{tpu_custom_call.1}
  #allocation0 [shape = 'u32[]', space=smem, size = 0x4, offset = 0x4, fixed_abs, tag = 'smem constant byte address 0x4 - core index']
  #allocation1 [shape = 'u32[72,128]{1,0:T(1,128)}', space=vmem, size = 0x9000, scoped, tag = 'internal scratch']
  %s0 = inlined_call_operand.hbm [shape: f32[2,128], index: 0, kind: input, shape index: {}]
  %s1 = inlined_call_operand.hbm [shape: f32[2,128], index: 1, kind: input, shape index: {}]
  %s2 = inlined_call_operand.hbm [shape: f32[1,1], index: 2, kind: output, shape index: {}]
  %s3 = sld [smem:[#allocation0]]
  $region26: #{tpu_custom_call.1} parent=0
    _
  %s5 = ssub.s32 1, %s3
  %s6 = scalar_select 0, %s5, %s3
  $region1: #{tpu_custom_call.1} parent=0
    #allocation2 [shape = 'u8[1024]{0}', space=vmem, size = 0x400, scoped, tag = 'input window, operand 0, single buffered']
    #allocation3 [shape = 's32[1]{0}', space=sflag, size = 0x4, scoped, tag = 'scoped memory for tpu_custom_call.1']
    #allocation4 [shape = 's32[1]{0}', space=sflag, size = 0x4, scoped, tag = 'scoped memory for tpu_custom_call.1']
    #allocation5 [shape = 'u8[1024]{0}', space=vmem, size = 0x400, scoped, tag = 'input window, operand 1, single buffered']
    #allocation6 [shape = 's32[1]{0}', space=sflag, size = 0x4, scoped, tag = 'scoped memory for tpu_custom_call.1']
    #allocation7 [shape = 'u8[512]{0}', space=vmem, size = 0x400, scoped, tag = 'output window, operand 0, single buffered']
    %7 = vsyncpa [#allocation3], 0
    %8 = vsyncpa [#allocation6], 0
    %9 = vsyncpa [#allocation4], 0
    // Predicated region
    $region2: #{tpu_custom_call.1} parent=1 // pred_check
      _
    $region3: #{tpu_custom_call.1} parent=1 // pred_check_branch
      %11 = sbr.rel (0) target = $region5
    $region4: #{tpu_custom_call.1} parent=1 // pred_region
      %13 = vsyncadd [#allocation3], 0
      %s15 = sshll.u32 %s0, 4
      %s16 = int_to_ptr.hbm [resolvable:$true] %s15
      %s17 = sshll.u32 [#allocation2], 4
      %s18 = int_to_ptr.vmem [resolvable:$true] %s17
      %20 = dma.hbm_to_vmem [thread:$0]  %s16, 32, %s18, [#allocation3]
    $region5: #{tpu_custom_call.1} parent=1 // pred_fallthru
      _
    // Predicated region
    $region6: #{tpu_custom_call.1} parent=1 // pred_check
      _
    $region7: #{tpu_custom_call.1} parent=1 // pred_check_branch
      %22 = sbr.rel (0) target = $region9
    $region8: #{tpu_custom_call.1} parent=1 // pred_region
      %24 = vsyncadd [#allocation6], 0
      %s26 = sshll.u32 %s1, 4
      %s27 = int_to_ptr.hbm [resolvable:$true] %s26
      %s28 = sshll.u32 [#allocation5], 4
      %s29 = int_to_ptr.vmem [resolvable:$true] %s28
      %31 = dma.hbm_to_vmem [thread:$0]  %s27, 32, %s29, [#allocation6]
    $region9: #{tpu_custom_call.1} parent=1 // pred_fallthru
      _
    // Predicated region
    $region10: #{tpu_custom_call.1} parent=1 // pred_check
      _
    $region11: #{tpu_custom_call.1} parent=1 // pred_check_branch
      %33 = sbr.rel (0) target = $region13
    $region12: #{tpu_custom_call.1} parent=1 // pred_region
      %35 = dma.done [#allocation3], 32
    $region13: #{tpu_custom_call.1} parent=1 // pred_fallthru
      _
    // Predicated region
    $region14: #{tpu_custom_call.1} parent=1 // pred_check
      _
    $region15: #{tpu_custom_call.1} parent=1 // pred_check_branch
      %37 = sbr.rel (0) target = $region17
    $region16: #{tpu_custom_call.1} parent=1 // pred_region
      %39 = dma.done [#allocation6], 32
    $region17: #{tpu_custom_call.1} parent=1 // pred_fallthru
      _
    %v40 = vld [vmem:[#allocation2] sm:$0x3]
    %v41 = vld [vmem:[#allocation5] sm:$0x3]
    %vm42 = vcmp.ne.f32.partialorder %v40, 0.0
    %v43 = vsel %vm42, 1, 0
    %v44 = vcvt.s32.f32 %v43
    %vm45 = vcmp.ne.f32.partialorder %v41, 0.0
    %v46 = vsel %vm45, 1, 0
    %v47 = vcvt.s32.f32 %v46
    %v48 = vsub.f32 1.0, %v44
    %v49 = vsub.f32 1.0, %v47
    %v50 = vmul.f32 %v44, %v47
    %vm51 = vcmask 1041408
    %v52 = vsel %vm51, %v50, 0.0
    %53 = vadd.xlane.f32.xlu0 %v52
    %v54 = vpop.xlane.xlu0 %53
    %v55 = vsel %vm51, %v54, 0.0
    %v56 = vrot.slane %v55, 4
    %v57 = vadd.f32 %v55, %v56
    %v58 = vrot.slane %v57, 2
    %v59 = vadd.f32 %v57, %v58
    %v60 = vrot.slane %v59, 1
    %v61 = vadd.f32 %v59, %v60
    %v62 = vmul.f32 %v44, %v49
    %v63 = vsel %vm51, %v62, 0.0
    %64 = vadd.xlane.f32.xlu0 %v63
    %v65 = vpop.xlane.xlu0 %64
    %v66 = vsel %vm51, %v65, 0.0
    %v67 = vrot.slane %v66, 4
    %v68 = vadd.f32 %v66, %v67
    %v69 = vrot.slane %v68, 2
    %v70 = vadd.f32 %v68, %v69
    %v71 = vrot.slane %v70, 1
    %v72 = vadd.f32 %v70, %v71
    %v73 = vmul.f32 %v48, %v47
    %v74 = vsel %vm51, %v73, 0.0
    %75 = vadd.xlane.f32.xlu0 %v74
    %v76 = vpop.xlane.xlu0 %75
    %v77 = vsel %vm51, %v76, 0.0
    %v78 = vrot.slane %v77, 4
    %v79 = vadd.f32 %v77, %v78
    %v80 = vrot.slane %v79, 2
    %v81 = vadd.f32 %v79, %v80
    %v82 = vrot.slane %v81, 1
    %v83 = vadd.f32 %v81, %v82
    %v84 = vmul.f32 %v48, %v49
    %v85 = vsel %vm51, %v84, 0.0
    %86 = vadd.xlane.f32.xlu0 %v85
    %v87 = vpop.xlane.xlu0 %86
    %v88 = vsel %vm51, %v87, 0.0
    %v89 = vrot.slane %v88, 4
    %v90 = vadd.f32 %v88, %v89
    %v91 = vrot.slane %v90, 2
    %v92 = vadd.f32 %v90, %v91
    %v93 = vrot.slane %v92, 1
    %v94 = vadd.f32 %v92, %v93
    %v95 = vmul.f32 %v61, %v94
    %v96 = vmul.f32 %v72, %v83
    %v97 = vsub.f32 %v95, %v96
    %v98 = vadd.f32 %v61, %v72
    %v99 = vadd.f32 %v61, %v83
    %v100 = vsub.f32 %v61, %v94
    %v101 = vmin.f32 %v98, %v99
    %v102 = vmul.f32 %v101, 256.0
    %v103 = vmul.f32 %v98, %v99
    %v104 = vsub.f32 %v102, %v103
    %v105 = vmax.f32 %v104, 1.0
    %v106 = vmax.f32 %v100, 0.0
    %v107 = vmul.f32 %v106, 256.0
    %v108 = vsub.f32 %v103, %v107
    %v109 = vmax.f32 %v108, 1.0
    %vm110 = vcmp.gt.f32.partialorder %v97, 0.0
    %v111 = vsel %vm110, %v105, %v109
    %v112 = vrcp.pop %v111
    %v113 = vmul.f32 %v111, %v112
    %v114 = vsub.f32 1.0, %v113
    %v115 = vmul.f32 %v112, %v114
    %v116 = vadd.f32 %v112, %v115
    %vm117 = vweird.f32 %v111
    %vm118 = vweird.f32 %v112
    %vm119 = vmor %vm117, %vm118
    %v120 = vsel %vm119, %v112, %v116
    %v121 = vand.u32 2147483647, %v111
    %vm122 = vcmp.eq.f32.partialorder %v121, 8.507059e+37
    %v123 = vand.u32 %v111, 2147483648
    %v124 = vor.u32 1.1754944e-38, %v123
    %v125 = vsel %vm122, %v124, %v120
    %v126 = vmul.f32 %v97, %v125
    %vm127 = vcmask 0
    %128 = vst.msk [vmem:[#allocation7] sm:$0x1] %vm127, %v126
    // Predicated region
    $region18: #{tpu_custom_call.1} parent=1 // pred_check
      _
    $region19: #{tpu_custom_call.1} parent=1 // pred_check_branch
      %130 = sbr.rel (0) target = $region21
    $region20: #{tpu_custom_call.1} parent=1 // pred_region
      %132 = vsyncadd [#allocation4], 0
      %s134 = sshll.u32 [#allocation7], 4
      %s135 = int_to_ptr.vmem [resolvable:$true] %s134
      %s136 = sshll.u32 %s2, 4
      %s137 = int_to_ptr.hbm [resolvable:$true] %s136
      %139 = dma.vmem_to_hbm [thread:$0]  %s135, 16, %s137, [#allocation4]
    $region21: #{tpu_custom_call.1} parent=1 // pred_fallthru
      _
    // Predicated region
    $region22: #{tpu_custom_call.1} parent=1 // pred_check
      _
    $region23: #{tpu_custom_call.1} parent=1 // pred_check_branch
      %141 = sbr.rel (0) target = $region25
    $region24: #{tpu_custom_call.1} parent=1 // pred_region
      %143 = dma.done [#allocation4], 16
    $region25: #{tpu_custom_call.1} parent=1 // pred_fallthru
      _
    %144 = vsyncpa [#allocation3], 1
    %145 = vsyncpa [#allocation6], 1
    %146 = vsyncpa [#allocation4], 1

</llo_original>
